<compile_context>
chip_gen: v6e
topology: v6e:2x2x1
jax: 0.10.0
libtpu: 0.0.40
codegen_flags: <defaults>
</compile_context>

<pallas_src>
import jax
import jax.numpy as jnp
from jax.experimental import pallas as pl
from jax.experimental.pallas import tpu as pltpu


def _round_up(n, m):
    return ((n + m - 1) // m) * m


def _mlp_kernel(xt_ref, w1_ref, b1_ref, w2_ref, b2_ref, o_ref):
    xt = xt_ref[...]                                  # [10, TILE_B] f32
    w1 = w1_ref[...]                                  # [50, 10]     f32
    b1 = b1_ref[...]                                  # [50, 1]      f32
    w2 = w2_ref[...]                                  # [1, 50]      f32
    b2 = b2_ref[...]                                  # [1, 1]       f32

    h = jnp.dot(w1, xt, preferred_element_type=jnp.float32) + b1   # [50, TILE_B] (MXU)
    h = jnp.maximum(h, 0.0)                                        # ReLU (VPU)
    y = jnp.dot(w2, h, preferred_element_type=jnp.float32) + b2    # [1, TILE_B]  (MXU)
    o_ref[...] = y.astype(o_ref.dtype)


def bandwidth_predictor_forward(x, w1, b1, w2, b2, *, tile_b=2048):
    """x: [B, 10] f32, w1: [50,10], b1: [50,1], w2: [1,50], b2: [1,1] -> [B, 1] f32."""
    B, d_in = x.shape
    d_hid = w1.shape[0]

    # Batch tile: multiple of 128 lanes, capped at tile_b, covering small batches.
    tb = min(int(tile_b), _round_up(max(B, 1), 128))
    B_pad = _round_up(B, tb)
    num_tiles = B_pad // tb

    # Batch-on-lanes layout + zero-pad the batch to a multiple of the tile.
    xt = jnp.pad(x.T, ((0, 0), (0, B_pad - B)))       # [10, B_pad]

    out = pl.pallas_call(
        _mlp_kernel,
        out_shape=jax.ShapeDtypeStruct((1, B_pad), jnp.float32),
        grid=(num_tiles,),
        in_specs=[
            pl.BlockSpec((d_in, tb), lambda i: (0, i)),     # x tile (pipelined)
            pl.BlockSpec((d_hid, d_in), lambda i: (0, 0)),  # w1 (VMEM-resident)
            pl.BlockSpec((d_hid, 1), lambda i: (0, 0)),     # b1
            pl.BlockSpec((1, d_hid), lambda i: (0, 0)),     # w2
            pl.BlockSpec((1, 1), lambda i: (0, 0)),         # b2
        ],
        out_specs=pl.BlockSpec((1, tb), lambda i: (0, i)),  # lane-dense output
        compiler_params=pltpu.CompilerParams(
            dimension_semantics=("parallel",),
        ),
    )(xt, w1, b1, w2, b2)

    return out[:, :B].reshape(B, 1)


def init_params(key):
    """Deterministic synthetic parameters matching nn.Linear(10,50) / nn.Linear(50,1)."""
    k1, k2, k3, k4 = jax.random.split(key, 4)
    # PyTorch nn.Linear default init: U(-1/sqrt(fan_in), 1/sqrt(fan_in)); PyTorch layout [out, in].
    lim1 = 1.0 / jnp.sqrt(10.0)
    lim2 = 1.0 / jnp.sqrt(50.0)
    w1 = jax.random.uniform(k1, (50, 10), jnp.float32, -lim1, lim1)
    b1 = jax.random.uniform(k2, (50, 1), jnp.float32, -lim1, lim1)
    w2 = jax.random.uniform(k3, (1, 50), jnp.float32, -lim2, lim2)
    b2 = jax.random.uniform(k4, (1, 1), jnp.float32, -lim2, lim2)
    return w1, b1, w2, b2


def _reference(x, w1, b1, w2, b2):
    h = jnp.maximum(x @ w1.T + b1.reshape(1, -1), 0.0)
    return h @ w2.T + b2.reshape(1, -1)


if __name__ == "__main__":
    key = jax.random.PRNGKey(0)
    kx, kp, kx2 = jax.random.split(key, 3)
    w1, b1, w2, b2 = init_params(kp)

    # Small-shape check (module-consistent: batch=2, in_features=10).
    B = 2
    x = jax.random.normal(kx, (B, 10), dtype=jnp.float32)
    out = bandwidth_predictor_forward(x, w1, b1, w2, b2)
    jax.block_until_ready(out)
    ref = _reference(x, w1, b1, w2, b2)
    assert out.shape == (B, 1)
    assert jnp.allclose(out, ref, atol=1e-5, rtol=1e-5)

    # Multi-tile check: batch not divisible by the tile, exercises tiling + padding.
    B2 = 300
    x2 = jax.random.normal(kx2, (B2, 10), dtype=jnp.float32)
    out2 = bandwidth_predictor_forward(x2, w1, b1, w2, b2, tile_b=128)
    jax.block_until_ready(out2)
    ref2 = _reference(x2, w1, b1, w2, b2)
    assert out2.shape == (B2, 1)
    assert jnp.allclose(out2, ref2, atol=1e-5, rtol=1e-5)

    print("KERNEL_OK")
</pallas_src>

<mosaic_0001>
module attributes {stable_mosaic.version = 11 : i64} {
  func.func @_mlp_kernel(%arg0: i32, %arg1: memref<10x128xf32, #tpu.memory_space<vmem>>, %arg2: memref<50x10xf32, #tpu.memory_space<vmem>>, %arg3: memref<50x1xf32, #tpu.memory_space<vmem>>, %arg4: memref<1x50xf32, #tpu.memory_space<vmem>>, %arg5: memref<1x1xf32, #tpu.memory_space<vmem>>, %arg6: memref<1x128xf32, #tpu.memory_space<vmem>>) attributes {dimension_semantics = [#tpu.dimension_semantics<parallel>], iteration_bounds = array<i64: 1>, scalar_prefetch = 0 : i64, scratch_operands = 0 : i64, tpu.core_type = #tpu.core_type<tc>, window_params = [{transform_indices = @transform_0, window_bounds = array<i64: 10, 128>}, {pipeline_mode = #tpu.pipeline_mode<synchronous>, transform_indices = @transform_1, window_bounds = array<i64: 50, 10>}, {pipeline_mode = #tpu.pipeline_mode<synchronous>, transform_indices = @transform_2, window_bounds = array<i64: 50, 1>}, {pipeline_mode = #tpu.pipeline_mode<synchronous>, transform_indices = @transform_3, window_bounds = array<i64: 1, 50>}, {pipeline_mode = #tpu.pipeline_mode<synchronous>, transform_indices = @transform_4, window_bounds = array<i64: 1, 1>}, {transform_indices = @transform_5, window_bounds = array<i64: 1, 128>}]} {
    %c0 = arith.constant 0 : index
    %c0_0 = arith.constant 0 : index
    %0 = vector.load %arg1[%c0, %c0_0] : memref<10x128xf32, #tpu.memory_space<vmem>>, vector<10x128xf32>
    %c0_1 = arith.constant 0 : index
    %c0_2 = arith.constant 0 : index
    %1 = vector.load %arg2[%c0_1, %c0_2] : memref<50x10xf32, #tpu.memory_space<vmem>>, vector<50x10xf32>
    %c0_3 = arith.constant 0 : index
    %c0_4 = arith.constant 0 : index
    %2 = vector.load %arg3[%c0_3, %c0_4] : memref<50x1xf32, #tpu.memory_space<vmem>>, vector<50x1xf32>
    %c0_5 = arith.constant 0 : index
    %c0_6 = arith.constant 0 : index
    %3 = vector.load %arg4[%c0_5, %c0_6] : memref<1x50xf32, #tpu.memory_space<vmem>>, vector<1x50xf32>
    %c0_7 = arith.constant 0 : index
    %c0_8 = arith.constant 0 : index
    %4 = vector.load %arg5[%c0_7, %c0_8] : memref<1x1xf32, #tpu.memory_space<vmem>>, vector<1x1xf32>
    %cst = arith.constant dense<0.000000e+00> : vector<50x128xf32>
    %5 = tpu.matmul %1, %0, %cst {dimension_numbers = #tpu.dot_dimension_numbers<[1], [0], [0], [1], [0, 0, 1, 1], [], []>} : vector<50x10xf32>, vector<10x128xf32>, vector<50x128xf32> -> vector<50x128xf32>
    %6 = vector.broadcast %2 : vector<50x1xf32> to vector<50x128xf32>
    %7 = arith.addf %5, %6 : vector<50x128xf32>
    %cst_9 = arith.constant 0.000000e+00 : f32
    %8 = vector.broadcast %cst_9 : f32 to vector<50x128xf32>
    %9 = arith.maximumf %7, %8 : vector<50x128xf32>
    %cst_10 = arith.constant dense<0.000000e+00> : vector<1x128xf32>
    %10 = tpu.matmul %3, %9, %cst_10 {dimension_numbers = #tpu.dot_dimension_numbers<[1], [0], [0], [1], [0, 0, 1, 1], [], []>} : vector<1x50xf32>, vector<50x128xf32>, vector<1x128xf32> -> vector<1x128xf32>
    %11 = vector.broadcast %4 : vector<1x1xf32> to vector<1x128xf32>
    %12 = arith.addf %10, %11 : vector<1x128xf32>
    %c0_11 = arith.constant 0 : index
    %c0_12 = arith.constant 0 : index
    %13 = vector.load %arg6[%c0_11, %c0_12] : memref<1x128xf32, #tpu.memory_space<vmem>>, vector<1x128xf32>
    tpu.vector_store %arg6[%c0_11, %c0_12], %12 {strides = array<i32>} : memref<1x128xf32, #tpu.memory_space<vmem>>, vector<1x128xf32>,
    return
  }
  func.func @transform_0(%arg0: i32) -> (i32, i32) {
    %c0_i32 = arith.constant 0 : i32
    %c0_i32_0 = arith.constant 0 : i32
    return %c0_i32, %arg0 : i32, i32
  }
  func.func @transform_1(%arg0: i32) -> (i32, i32) {
    %c0_i32 = arith.constant 0 : i32
    %c0_i32_0 = arith.constant 0 : i32
    %c0_i32_1 = arith.constant 0 : i32
    return %c0_i32, %c0_i32_0 : i32, i32
  }
  func.func @transform_2(%arg0: i32) -> (i32, i32) {
    %c0_i32 = arith.constant 0 : i32
    %c0_i32_0 = arith.constant 0 : i32
    %c0_i32_1 = arith.constant 0 : i32
    return %c0_i32, %c0_i32_0 : i32, i32
  }
  func.func @transform_3(%arg0: i32) -> (i32, i32) {
    %c0_i32 = arith.constant 0 : i32
    %c0_i32_0 = arith.constant 0 : i32
    %c0_i32_1 = arith.constant 0 : i32
    return %c0_i32, %c0_i32_0 : i32, i32
  }
  func.func @transform_4(%arg0: i32) -> (i32, i32) {
    %c0_i32 = arith.constant 0 : i32
    %c0_i32_0 = arith.constant 0 : i32
    %c0_i32_1 = arith.constant 0 : i32
    return %c0_i32, %c0_i32_0 : i32, i32
  }
  func.func @transform_5(%arg0: i32) -> (i32, i32) {
    %c0_i32 = arith.constant 0 : i32
    %c0_i32_0 = arith.constant 0 : i32
    return %c0_i32, %arg0 : i32, i32
  }
}

</mosaic_0001>

<llo_original>
// kernel: tpu_custom_call.1
$region0: #{tpu_custom_call.1}
  #allocation0 [shape = 'u32[]', space=smem, size = 0x4, offset = 0x4, fixed_abs, tag = 'smem constant byte address 0x4 - core index']
  #allocation1 [shape = 'u32[144,128]{1,0:T(1,128)}', space=vmem, size = 0x12000, scoped, tag = 'internal scratch']
  #allocation2 [shape = 'f32[1,1]{1,0:T(1,128)S(1)}', space=vmem, size = 0x200, scoped, tag = 'scoped memory for tpu_custom_call.1']
  %s0 = inlined_call_operand.vmem [shape: f32[10,128], index: 0, kind: input, shape index: {}]
  %s1 = inlined_call_operand.vmem [shape: f32[50,10], index: 1, kind: input, shape index: {}]
  %s2 = inlined_call_operand.vmem [shape: f32[50,1], index: 2, kind: input, shape index: {}]
  %s3 = inlined_call_operand.vmem [shape: f32[1,50], index: 3, kind: input, shape index: {}]
  %s4 = inlined_call_operand.<no memory space> [shape: f32[1,1], index: 4, kind: input, shape index: {}]
  %s5 = inlined_call_operand.hbm [shape: f32[1,128], index: 5, kind: output, shape index: {}]
  %s6 = sld [smem:[#allocation0]]
  $region30: #{tpu_custom_call.1} parent=0
    _
  %s8 = ssub.s32 1, %s6
  %s9 = scalar_select 0, %s8, %s6
  %v10 = vstv %s4
  %11 = vst [vmem:[#allocation2] sm:$0x1] %v10
  $region1: #{tpu_custom_call.1} parent=0
    #allocation3 [shape = 'u8[512]{0}', space=vmem, size = 0x400, scoped, tag = 'output window, operand 0, single buffered']
    #allocation4 [shape = 's32[1]{0}', space=sflag, size = 0x4, scoped, tag = 'scoped memory for tpu_custom_call.1']
    %12 = vsyncpa [#allocation4], 0
    // Predicated region
    $region2: #{tpu_custom_call.1} parent=1 // pred_check
      _
    $region3: #{tpu_custom_call.1} parent=1 // pred_check_branch
      %14 = sbr.rel (0) target = $region5
    $region4: #{tpu_custom_call.1} parent=1 // pred_region
      _
    $region5: #{tpu_custom_call.1} parent=1 // pred_fallthru
      _
    // Predicated region
    $region6: #{tpu_custom_call.1} parent=1 // pred_check
      _
    $region7: #{tpu_custom_call.1} parent=1 // pred_check_branch
      %16 = sbr.rel (0) target = $region9
    $region8: #{tpu_custom_call.1} parent=1 // pred_region
      _
    $region9: #{tpu_custom_call.1} parent=1 // pred_fallthru
      _
    // Predicated region
    $region10: #{tpu_custom_call.1} parent=1 // pred_check
      _
    $region11: #{tpu_custom_call.1} parent=1 // pred_check_branch
      %18 = sbr.rel (0) target = $region13
    $region12: #{tpu_custom_call.1} parent=1 // pred_region
      _
    $region13: #{tpu_custom_call.1} parent=1 // pred_fallthru
      _
    // Predicated region
    $region14: #{tpu_custom_call.1} parent=1 // pred_check
      _
    $region15: #{tpu_custom_call.1} parent=1 // pred_check_branch
      %20 = sbr.rel (0) target = $region17
    $region16: #{tpu_custom_call.1} parent=1 // pred_region
      _
    $region17: #{tpu_custom_call.1} parent=1 // pred_fallthru
      _
    // Predicated region
    $region18: #{tpu_custom_call.1} parent=1 // pred_check
      _
    $region19: #{tpu_custom_call.1} parent=1 // pred_check_branch
      %22 = sbr.rel (0) target = $region21
    $region20: #{tpu_custom_call.1} parent=1 // pred_region
      _
    $region21: #{tpu_custom_call.1} parent=1 // pred_fallthru
      _
    %v23 = vld [vmem:[%s0] sm:$0xff]
    %v24 = vld [vmem:[%s0 + $0x8] sm:$0x3]
    %v25 = vld [vmem:[%s1] sm:$0xff]
    %v26 = vld [vmem:[%s1 + $0x8] sm:$0xff]
    %v27 = vld [vmem:[%s1 + $0x10] sm:$0xff]
    %v28 = vld [vmem:[%s1 + $0x18] sm:$0xff]
    %v29 = vld [vmem:[%s1 + $0x20] sm:$0xff]
    %v30 = vld [vmem:[%s1 + $0x28] sm:$0xff]
    %v31 = vld [vmem:[%s1 + $0x30] sm:$0x3]
    %v32 = vld [vmem:[%s2] sm:$0xff]
    %v33 = vld [vmem:[%s2 + $0x8] sm:$0xff]
    %v34 = vld [vmem:[%s2 + $0x10] sm:$0xff]
    %v35 = vld [vmem:[%s2 + $0x18] sm:$0xff]
    %v36 = vld [vmem:[%s2 + $0x20] sm:$0xff]
    %v37 = vld [vmem:[%s2 + $0x28] sm:$0xff]
    %v38 = vld [vmem:[%s2 + $0x30] sm:$0x3]
    %v39 = vld [vmem:[%s3] sm:$0x1]
    %v40 = vld [vmem:[#allocation2] sm:$0x1]
    %42 = vset.pattern.permute.xlu0 0
    %43 = vperm.xlu0 %42, %v32
    %v44 = vpop.permute.xlu0 %43
    %47 = vset.pattern.permute.xlu0 0
    %48 = vperm.xlu0 %47, %v33
    %v49 = vpop.permute.xlu0 %48
    %52 = vset.pattern.permute.xlu0 0
    %53 = vperm.xlu0 %52, %v34
    %v54 = vpop.permute.xlu0 %53
    %57 = vset.pattern.permute.xlu0 0
    %58 = vperm.xlu0 %57, %v35
    %v59 = vpop.permute.xlu0 %58
    %62 = vset.pattern.permute.xlu0 0
    %63 = vperm.xlu0 %62, %v36
    %v64 = vpop.permute.xlu0 %63
    %67 = vset.pattern.permute.xlu0 0
    %68 = vperm.xlu0 %67, %v37
    %v69 = vpop.permute.xlu0 %68
    %72 = vset.pattern.permute.xlu0 0
    %73 = vperm.xlu0 %72, %v38
    %v74 = vpop.permute.xlu0 %73
    %vm76 = vcmask 80896
    %v78 = vsel %vm76, %v25, 0
    %v81 = vsel %vm76, %v26, 0
    %v84 = vsel %vm76, %v27, 0
    %v87 = vsel %vm76, %v28, 0
    %v90 = vsel %vm76, %v29, 0
    %v93 = vsel %vm76, %v30, 0
    %v96 = vsel %vm76, %v31, 0
    %vm98 = vcmask 1041408
    %v100 = vsel %vm98, %v24, 0
    %102 = vmatprep.subr.mxu0 0.0
    %103 = vmatpush1.msra.mxu0 0.0
    %104 = vmatprep.subr.mxu0 0.0
    %105 = vmatpush1.msra.mxu0 0.0
    %106 = vmatprep.subr.mxu0 0.0
    %107 = vmatpush1.msra.mxu0 0.0
    %108 = vmatprep.subr.mxu0 0.0
    %109 = vmatpush1.msra.mxu0 0.0
    %110 = vmatprep.subr.mxu0 0.0
    %111 = vmatpush1.msra.mxu0 0.0
    %112 = vmatprep.subr.mxu0 0.0
    %113 = vmatpush1.msra.mxu0 0.0
    %114 = vmatprep.subr.mxu0 0.0
    %115 = vmatpush1.msra.mxu0 0.0
    %116 = vmatprep.subr.mxu0 0.0
    %117 = vmatpush1.msra.mxu0 0.0
    %118 = vmatprep.subr.mxu0 0.0
    %119 = vmatpush1.msra.mxu0 0.0
    %120 = vmatprep.subr.mxu0 0.0
    %121 = vmatpush1.msra.mxu0 0.0
    %122 = vmatprep.subr.mxu0 0.0
    %123 = vmatpush1.msra.mxu0 0.0
    %124 = vmatprep.subr.mxu0 0.0
    %125 = vmatpush1.msra.mxu0 0.0
    %126 = vmatprep.subr.mxu0 0.0
    %127 = vmatpush1.msra.mxu0 0.0
    %128 = vmatprep.subr.mxu0 0.0
    %129 = vmatpush1.msra.mxu0 0.0
    %130 = vmatprep.subr.mxu0 0.0
    %131 = vmatpush1.msra.mxu0 %v100
    %132 = vmatprep.subr.mxu0 0.0
    %133 = vmatpush1.msra.mxu0 %v23
    %134 = vmatprep.subr.mxu0 0.0
    %135 = vmatpush2.msra.mxu0 0.0
    %136 = vmatprep.subr.mxu0 0.0
    %137 = vmatpush2.msra.mxu0 0.0
    %138 = vmatprep.subr.mxu0 0.0
    %139 = vmatpush2.msra.mxu0 0.0
    %140 = vmatprep.subr.mxu0 0.0
    %141 = vmatpush2.msra.mxu0 0.0
    %142 = vmatprep.subr.mxu0 0.0
    %143 = vmatpush2.msra.mxu0 0.0
    %144 = vmatprep.subr.mxu0 0.0
    %145 = vmatpush2.msra.mxu0 0.0
    %146 = vmatprep.subr.mxu0 0.0
    %147 = vmatpush2.msra.mxu0 0.0
    %148 = vmatprep.subr.mxu0 0.0
    %149 = vmatpush2.msra.mxu0 0.0
    %150 = vmatprep.subr.mxu0 0.0
    %151 = vmatpush2.msra.mxu0 0.0
    %152 = vmatprep.subr.mxu0 0.0
    %153 = vmatpush2.msra.mxu0 0.0
    %154 = vmatprep.subr.mxu0 0.0
    %155 = vmatpush2.msra.mxu0 0.0
    %156 = vmatprep.subr.mxu0 0.0
    %157 = vmatpush2.msra.mxu0 0.0
    %158 = vmatprep.subr.mxu0 0.0
    %159 = vmatpush2.msra.mxu0 0.0
    %160 = vmatprep.subr.mxu0 0.0
    %161 = vmatpush2.msra.mxu0 0.0
    %162 = vmatprep.subr.mxu0 0.0
    %163 = vmatpush2.msra.mxu0 0.0
    %164 = vmatprep.subr.mxu0 0.0
    %165 = vmatpush2.msra.mxu0 0.0
    %166 = vmatprep.mubr.f32.mxu0 0.0
    %167 = vmatmul.mubr.f32.gmra.mxu0 %v78
    %v168 = vpop.f32.mrf.mxu0
    %v169 = vadd.f32 %v44, %v168
    %v170 = vpop.f32.mrf.mxu0
    %171 = vmatprep.mubr.f32.mxu0 0.0
    %172 = vmatmul.mubr.f32.gmra.mxu0 %v81
    %v173 = vpop.f32.mrf.mxu0
    %v174 = vadd.f32 %v49, %v173
    %v175 = vpop.f32.mrf.mxu0
    %176 = vmatprep.mubr.f32.mxu0 0.0
    %177 = vmatmul.mubr.f32.gmra.mxu0 %v84
    %v178 = vpop.f32.mrf.mxu0
    %v179 = vadd.f32 %v54, %v178
    %v180 = vpop.f32.mrf.mxu0
    %181 = vmatprep.mubr.f32.mxu0 0.0
    %182 = vmatmul.mubr.f32.gmra.mxu0 %v87
    %v183 = vpop.f32.mrf.mxu0
    %v184 = vadd.f32 %v59, %v183
    %v185 = vpop.f32.mrf.mxu0
    %186 = vmatprep.mubr.f32.mxu0 0.0
    %187 = vmatmul.mubr.f32.gmra.mxu0 %v90
    %v188 = vpop.f32.mrf.mxu0
    %v189 = vadd.f32 %v64, %v188
    %v190 = vpop.f32.mrf.mxu0
    %191 = vmatprep.mubr.f32.mxu0 0.0
    %192 = vmatmul.mubr.f32.gmra.mxu0 %v93
    %v193 = vpop.f32.mrf.mxu0
    %v194 = vadd.f32 %v69, %v193
    %v195 = vpop.f32.mrf.mxu0
    %196 = vmatprep.mubr.f32.mxu0 0.0
    %197 = vmatmul.mubr.f32.gmra.mxu0 %v96
    %v198 = vpop.f32.mrf.mxu0
    %v199 = vadd.f32 %v74, %v198
    %v200 = vpop.f32.mrf.mxu0
    %201 = vdwg.mxu0
    %v202 = vmax.f32 %v169, 0.0
    %v203 = vmax.f32 %v174, 0.0
    %v204 = vmax.f32 %v179, 0.0
    %v205 = vmax.f32 %v184, 0.0
    %v206 = vmax.f32 %v189, 0.0
    %v207 = vmax.f32 %v194, 0.0
    %v208 = vmax.f32 %v199, 0.0
    %210 = vset.pattern.permute.xlu0 0
    %211 = vperm.xlu0 %210, %v40
    %v212 = vpop.permute.xlu0 %211
    %v214 = vlaneseq
    %v215 = vshrl.u32 %v214, 7
    %v216 = vsub.s32 0, %v215
    %v217 = vrot.slane %v212, %v216
    %vm218 = vcmask 408576
    %v220 = vsel %vm218, %v39, 0
    %v223 = vsel %vm98, %v208, 0
    %225 = vmatprep.subr.mxu0 0.0
    %226 = vmatpush1.msra.mxu0 0.0
    %227 = vmatprep.subr.mxu0 0.0
    %228 = vmatpush1.msra.mxu0 0.0
    %229 = vmatprep.subr.mxu0 0.0
    %230 = vmatpush1.msra.mxu0 0.0
    %231 = vmatprep.subr.mxu0 0.0
    %232 = vmatpush1.msra.mxu0 0.0
    %233 = vmatprep.subr.mxu0 0.0
    %234 = vmatpush1.msra.mxu0 0.0
    %235 = vmatprep.subr.mxu0 0.0
    %236 = vmatpush1.msra.mxu0 0.0
    %237 = vmatprep.subr.mxu0 0.0
    %238 = vmatpush1.msra.mxu0 0.0
    %239 = vmatprep.subr.mxu0 0.0
    %240 = vmatpush1.msra.mxu0 0.0
    %241 = vmatprep.subr.mxu0 0.0
    %242 = vmatpush1.msra.mxu0 0.0
    %243 = vmatprep.subr.mxu0 0.0
    %244 = vmatpush1.msra.mxu0 %v223
    %245 = vmatprep.subr.mxu0 0.0
    %246 = vmatpush1.msra.mxu0 %v207
    %247 = vmatprep.subr.mxu0 0.0
    %248 = vmatpush1.msra.mxu0 %v206
    %249 = vmatprep.subr.mxu0 0.0
    %250 = vmatpush1.msra.mxu0 %v205
    %251 = vmatprep.subr.mxu0 0.0
    %252 = vmatpush1.msra.mxu0 %v204
    %253 = vmatprep.subr.mxu0 0.0
    %254 = vmatpush1.msra.mxu0 %v203
    %255 = vmatprep.subr.mxu0 0.0
    %256 = vmatpush1.msra.mxu0 %v202
    %257 = vmatprep.subr.mxu0 0.0
    %258 = vmatpush2.msra.mxu0 0.0
    %259 = vmatprep.subr.mxu0 0.0
    %260 = vmatpush2.msra.mxu0 0.0
    %261 = vmatprep.subr.mxu0 0.0
    %262 = vmatpush2.msra.mxu0 0.0
    %263 = vmatprep.subr.mxu0 0.0
    %264 = vmatpush2.msra.mxu0 0.0
    %265 = vmatprep.subr.mxu0 0.0
    %266 = vmatpush2.msra.mxu0 0.0
    %267 = vmatprep.subr.mxu0 0.0
    %268 = vmatpush2.msra.mxu0 0.0
    %269 = vmatprep.subr.mxu0 0.0
    %270 = vmatpush2.msra.mxu0 0.0
    %271 = vmatprep.subr.mxu0 0.0
    %272 = vmatpush2.msra.mxu0 0.0
    %273 = vmatprep.subr.mxu0 0.0
    %274 = vmatpush2.msra.mxu0 0.0
    %275 = vmatprep.subr.mxu0 0.0
    %276 = vmatpush2.msra.mxu0 0.0
    %277 = vmatprep.subr.mxu0 0.0
    %278 = vmatpush2.msra.mxu0 0.0
    %279 = vmatprep.subr.mxu0 0.0
    %280 = vmatpush2.msra.mxu0 0.0
    %281 = vmatprep.subr.mxu0 0.0
    %282 = vmatpush2.msra.mxu0 0.0
    %283 = vmatprep.subr.mxu0 0.0
    %284 = vmatpush2.msra.mxu0 0.0
    %285 = vmatprep.subr.mxu0 0.0
    %286 = vmatpush2.msra.mxu0 0.0
    %287 = vmatprep.subr.mxu0 0.0
    %288 = vmatpush2.msra.mxu0 0.0
    %289 = vmatprep.mubr.f32.mxu0 0.0
    %290 = vmatmul.mubr.f32.gmra.mxu0 %v220
    %v291 = vpop.f32.mrf.mxu0
    %v292 = vadd.f32 %v217, %v291
    %v293 = vpop.f32.mrf.mxu0
    %294 = vdwg.mxu0
    %295 = vst [vmem:[#allocation3] sm:$0x1] %v292
    // Predicated region
    $region22: #{tpu_custom_call.1} parent=1 // pred_check
      _
    $region23: #{tpu_custom_call.1} parent=1 // pred_check_branch
      %297 = sbr.rel (0) target = $region25
    $region24: #{tpu_custom_call.1} parent=1 // pred_region
      %s299 = ssub.s32 16, 16
      %300 = vsyncadd [#allocation4], %s299
      %s302 = sshll.u32 [#allocation3], 4
      %s303 = int_to_ptr.vmem [resolvable:$true] %s302
      %305 = dma.vmem_to_hbm [thread:$0]  %s303, 16, %s5, [#allocation4]
    $region25: #{tpu_custom_call.1} parent=1 // pred_fallthru
      _
    // Predicated region
    $region26: #{tpu_custom_call.1} parent=1 // pred_check
      _
    $region27: #{tpu_custom_call.1} parent=1 // pred_check_branch
      %307 = sbr.rel (0) target = $region29
    $region28: #{tpu_custom_call.1} parent=1 // pred_region
      %308 = dma.done [#allocation4], 16
    $region29: #{tpu_custom_call.1} parent=1 // pred_fallthru
      _
    %309 = vsyncpa [#allocation4], 1

</llo_original>
